<compile_context>
chip_gen: v6e
topology: v6e:2x2x1
jax: 0.10.0
libtpu: 0.0.40
codegen_flags: <defaults>
</compile_context>

<pallas_src>
import functools

import jax
import jax.numpy as jnp
from jax.experimental import pallas as pl
from jax.experimental.pallas import tpu as pltpu

_LOG2E = 1.4426950408889634
_PAD_SENTINEL = 1e18  # finite: (x - s)^2 ~ 1e36 stays finite in f32, exp2 -> 0


def _cdiv(a, b):
    return (a + b - 1) // b


def _round_up(a, b):
    return _cdiv(a, b) * b


def _bmse_kernel_single(xt_ref, t_row_ref, o_ref, *, c_nat, c_exp2):
    """Fast path: the whole target row fits one column tile (grid = (nr, 1)).

    xt_ref: (TM, 2) = [x | t_matching]   t_row_ref: (1, TN)   o_ref: (TM, 1)
    """
    xt = xt_ref[...]
    x = xt[:, 0:1]                                    # (TM, 1)
    d = x - t_row_ref[...]                            # (TM, TN) pairwise diff
    # exp(logits) = exp2(c_exp2 * d^2); logits <= 0 so every term is <= 1.
    s = jnp.sum(jnp.exp2(c_exp2 * d * d), axis=1, keepdims=True)
    dd = x - xt[:, 1:2]                               # x_i - t_i
    o_ref[...] = jnp.log(s) - c_nat * dd * dd         # lse_i - logits[i, i]


def _bmse_kernel_acc(xt_ref, t_row_ref, o_ref, l_ref, *, c_nat, c_exp2):
    """General path: accumulate sum_j exp(logits) across column tiles.

    No running max needed: logits <= 0, so exp never overflows.
    """
    j = pl.program_id(1)

    @pl.when(j == 0)
    def _init():
        l_ref[...] = jnp.zeros_like(l_ref)

    xt = xt_ref[...]
    x = xt[:, 0:1]                                    # (TM, 1)
    d = x - t_row_ref[...]                            # (TM, TN)
    l_ref[...] += jnp.sum(jnp.exp2(c_exp2 * d * d), axis=1, keepdims=True)

    @pl.when(j == pl.num_programs(1) - 1)
    def _finalize():
        dd = x - xt[:, 1:2]
        o_ref[...] = jnp.log(l_ref[...]) - c_nat * dd * dd


def balanced_mse_loss(inputs, targets, sigma, *, row_tile=512, col_tile=4096):
    """JAX/Pallas equivalent of BalancedMSELoss.forward."""
    if inputs.ndim >= 2:
        inputs = inputs[..., 0]
    x = inputs.reshape(-1).astype(jnp.float32)
    t = targets.reshape(-1).astype(jnp.float32)
    n = x.shape[0]
    assert t.shape[0] == n, "inputs/targets must flatten to the same length"

    # ---- tile selection -----------------------------------------------------
    # Columns: single tile whenever the 128-padded width fits col_tile (fast
    # path); otherwise the smallest lane-aligned tile that minimizes padding.
    n_col = _cdiv(_round_up(n, 128), col_tile)
    tn = _round_up(_cdiv(n, n_col), 128)
    nc_pad = n_col * tn
    # Rows: >= 2 row tiles when n permits (feeds both v7x TensorCores);
    # sublane-aligned tile sized so row-padding overshoot stays small.
    n_row = max(_cdiv(n, row_tile), 2 if n >= 16 else 1)
    tm = max(8, _round_up(_cdiv(n, n_row), 8))
    nr_pad = n_row * tm

    # ---- padded, lane-packed operands ---------------------------------------
    # xt column 0 = x (padded rows -> junk output rows, sliced off below),
    # xt column 1 = matching-index targets (for logits[i, i]).
    xt = jnp.zeros((nr_pad, 2), jnp.float32)
    xt = xt.at[:n, 0].set(x).at[:n, 1].set(t)
    # Padded target columns get a large *finite* sentinel -> exp underflows to 0.
    t_row = jnp.full((1, nc_pad), _PAD_SENTINEL, jnp.float32).at[0, :n].set(t)

    c_nat = float(-0.5 / (float(sigma) ** 2))
    c_exp2 = c_nat * _LOG2E

    in_specs = [
        pl.BlockSpec((tm, 2), lambda i, j: (i, 0)),   # [x | t_diag] row tile
        pl.BlockSpec((1, tn), lambda i, j: (0, j)),   # target column tile
    ]
    out_spec = pl.BlockSpec((tm, 1), lambda i, j: (i, 0))

    if n_col == 1:
        kernel = functools.partial(_bmse_kernel_single, c_nat=c_nat, c_exp2=c_exp2)
        scratch = []
    else:
        kernel = functools.partial(_bmse_kernel_acc, c_nat=c_nat, c_exp2=c_exp2)
        scratch = [pltpu.VMEM((tm, 1), jnp.float32)]   # running sum of exp

    per_row = pl.pallas_call(
        kernel,
        out_shape=jax.ShapeDtypeStruct((nr_pad, 1), jnp.float32),
        grid_spec=pltpu.PrefetchScalarGridSpec(
            num_scalar_prefetch=0,
            grid=(n_row, n_col),
            in_specs=in_specs,
            out_specs=out_spec,
            scratch_shapes=scratch,
        ),
        compiler_params=pltpu.CompilerParams(
            dimension_semantics=("parallel", "arbitrary"),
            vmem_limit_bytes=48 * 1024 * 1024),
    )(xt, t_row)

    # Padded rows are junk by construction: slice them off *before* the mean.
    ce = jnp.mean(per_row[:n, 0])
    return ce * jnp.float32(2.0 * float(sigma) ** 2)


def _reference(inputs, targets, sigma):
    """Pure-JAX reference mirroring the PyTorch code."""
    if inputs.ndim >= 2:
        inputs = inputs[..., 0]
    x = inputs.reshape(-1, 1).astype(jnp.float32)
    t = targets.reshape(-1, 1).astype(jnp.float32)
    logits = -0.5 * (x - t.T) ** 2 / (sigma ** 2)
    lse = jax.scipy.special.logsumexp(logits, axis=1)
    diag = jnp.diagonal(logits)
    loss = jnp.mean(lse - diag)
    return loss * (2.0 * sigma ** 2)


if __name__ == "__main__":
    SIGMA = 1.5  # deterministic in-script "config" value for the loss

    key = jax.random.PRNGKey(0)
    k1, k2, k3, k4 = jax.random.split(key, 4)

    # Case 1: NCHW-like inputs (2, 4, 16, 16); inputs[..., 0] -> (2, 4, 16) -> N = 128.
    inputs = jax.random.normal(k1, (2, 4, 16, 16), dtype=jnp.float32)
    targets = jax.random.normal(k2, (2, 4, 16), dtype=jnp.float32)
    loss = jax.block_until_ready(balanced_mse_loss(inputs, targets, SIGMA))
    ref = _reference(inputs, targets, SIGMA)
    assert jnp.allclose(loss, ref, rtol=1e-5, atol=1e-5), (loss, ref)

    # Case 2: ragged N = 200 (not tile-aligned) exercises padding + fast path.
    inputs2 = jax.random.normal(k3, (2, 4, 25, 16), dtype=jnp.float32)
    targets2 = jax.random.normal(k4, (2, 4, 25), dtype=jnp.float32)
    loss2 = jax.block_until_ready(balanced_mse_loss(inputs2, targets2, SIGMA))
    ref2 = _reference(inputs2, targets2, SIGMA)
    assert jnp.allclose(loss2, ref2, rtol=1e-5, atol=1e-5), (loss2, ref2)

    # Case 3: force tiny tiles to exercise the multi-column-tile accumulating kernel.
    loss3 = jax.block_until_ready(
        balanced_mse_loss(inputs2, targets2, SIGMA, row_tile=64, col_tile=128))
    assert jnp.allclose(loss3, ref2, rtol=1e-5, atol=1e-5), (loss3, ref2)

    print("KERNEL_OK")
</pallas_src>

<mosaic_0001>
module attributes {stable_mosaic.version = 11 : i64} {
  func.func @_bmse_kernel_single(%arg0: i32, %arg1: i32, %arg2: memref<64x2xf32, #tpu.memory_space<vmem>>, %arg3: memref<1x128xf32, #tpu.memory_space<vmem>>, %arg4: memref<64x1xf32, #tpu.memory_space<vmem>>) attributes {dimension_semantics = [#tpu.dimension_semantics<parallel>, #tpu.dimension_semantics<arbitrary>], iteration_bounds = array<i64: 2, 1>, scalar_prefetch = 0 : i64, scratch_operands = 0 : i64, tpu.core_type = #tpu.core_type<tc>, window_params = [{transform_indices = @transform_0, window_bounds = array<i64: 64, 2>}, {transform_indices = @transform_1, window_bounds = array<i64: 1, 128>}, {transform_indices = @transform_2, window_bounds = array<i64: 64, 1>}]} {
    %c0 = arith.constant 0 : index
    %c0_0 = arith.constant 0 : index
    %0 = vector.load %arg2[%c0, %c0_0] : memref<64x2xf32, #tpu.memory_space<vmem>>, vector<64x2xf32>
    %1 = vector.extract_strided_slice %0 {offsets = [0, 0], sizes = [64, 1], strides = [1, 1]} : vector<64x2xf32> to vector<64x1xf32>
    %c0_1 = arith.constant 0 : index
    %c0_2 = arith.constant 0 : index
    %2 = vector.load %arg3[%c0_1, %c0_2] : memref<1x128xf32, #tpu.memory_space<vmem>>, vector<1x128xf32>
    %3 = vector.broadcast %1 : vector<64x1xf32> to vector<64x128xf32>
    %4 = vector.broadcast %2 : vector<1x128xf32> to vector<64x128xf32>
    %5 = arith.subf %3, %4 : vector<64x128xf32>
    %cst = arith.constant -0.3205989 : f32
    %6 = vector.broadcast %cst : f32 to vector<64x128xf32>
    %7 = arith.mulf %6, %5 : vector<64x128xf32>
    %8 = arith.mulf %7, %5 : vector<64x128xf32>
    %9 = math.exp2 %8 : vector<64x128xf32>
    %cst_3 = arith.constant dense<0.000000e+00> : vector<64xf32>
    %10 = vector.multi_reduction <add>, %9, %cst_3 [1] : vector<64x128xf32> to vector<64xf32>
    %11 = vector.shape_cast %10 : vector<64xf32> to vector<64x1xf32>
    %12 = vector.extract_strided_slice %0 {offsets = [0, 1], sizes = [64, 1], strides = [1, 1]} : vector<64x2xf32> to vector<64x1xf32>
    %13 = arith.subf %1, %12 : vector<64x1xf32>
    %14 = math.log %11 : vector<64x1xf32>
    %cst_4 = arith.constant -0.222222224 : f32
    %15 = vector.broadcast %cst_4 : f32 to vector<64x1xf32>
    %16 = arith.mulf %15, %13 : vector<64x1xf32>
    %17 = arith.mulf %16, %13 : vector<64x1xf32>
    %18 = arith.subf %14, %17 : vector<64x1xf32>
    %c0_5 = arith.constant 0 : index
    %c0_6 = arith.constant 0 : index
    %19 = vector.load %arg4[%c0_5, %c0_6] : memref<64x1xf32, #tpu.memory_space<vmem>>, vector<64x1xf32>
    tpu.vector_store %arg4[%c0_5, %c0_6], %18 {strides = array<i32>} : memref<64x1xf32, #tpu.memory_space<vmem>>, vector<64x1xf32>,
    return
  }
  func.func @transform_0(%arg0: i32, %arg1: i32) -> (i32, i32) {
    %c0_i32 = arith.constant 0 : i32
    %c0_i32_0 = arith.constant 0 : i32
    return %arg0, %c0_i32 : i32, i32
  }
  func.func @transform_1(%arg0: i32, %arg1: i32) -> (i32, i32) {
    %c0_i32 = arith.constant 0 : i32
    %c0_i32_0 = arith.constant 0 : i32
    return %c0_i32, %arg1 : i32, i32
  }
  func.func @transform_2(%arg0: i32, %arg1: i32) -> (i32, i32) {
    %c0_i32 = arith.constant 0 : i32
    %c0_i32_0 = arith.constant 0 : i32
    return %arg0, %c0_i32 : i32, i32
  }
}

</mosaic_0001>

<llo_original>
// kernel: tpu_custom_call.1
$region0: #{tpu_custom_call.1}
  #allocation0 [shape = 'u32[]', space=smem, size = 0x4, offset = 0x4, fixed_abs, tag = 'smem constant byte address 0x4 - core index']
  #allocation1 [shape = 'u32[144,128]{1,0:T(1,128)}', space=vmem, size = 0x12000, scoped, tag = 'internal scratch']
  %s0 = inlined_call_operand.vmem [shape: f32[128,2], index: 0, kind: input, shape index: {}]
  %s1 = inlined_call_operand.vmem [shape: f32[1,128], index: 1, kind: input, shape index: {}]
  %s2 = inlined_call_operand.vmem [shape: f32[128,1], index: 2, kind: output, shape index: {}]
  %s3 = sld [smem:[#allocation0]]
  $region41: #{tpu_custom_call.1} parent=0
    _
  %s5 = ssub.s32 1, %s3
  %s6 = scalar_select 0, %s5, %s3
  loop: start=0, step=1, limit=4
  $region2: #{tpu_custom_call.1} parent=0 // loop_pre_header
    _
  $region3: #{tpu_custom_call.1} parent=0 // loop_header
    %s8 = sphi 0, %s12
    %p9 = scmp.ge.s32.totalorder %s8, 4
    %s15 = sphi 0, %s27
    %s16 = sphi 0, %s23
    %s17 = sphi 0, %s15
    %s18 = sphi 0, %s16
    %s19 = sphi 0, %s17
    %s20 = sphi 0, %s18
    %s30 = sphi 0, %s32
    %s33 = sphi 0, %s30
    %s34 = sphi 0, %s33
    %s50 = sphi 0, %s34
    %s56 = sphi 0, %s58
    %s59 = sphi 0, %s56
    %s60 = sphi 0, %s59
    %s76 = sphi 0, %s60
    %s82 = sphi 0, %s84
    %s85 = sphi 0, %s82
    %s86 = sphi 0, %s85
    %s102 = sphi 0, %s86
  $region4: #{tpu_custom_call.1} parent=0 // loop_header_branch
    %11 = sbr.rel (%p9) target = $region8
  $region5: #{tpu_custom_call.1} parent=0 // loop_body
    %s13 = ssub.s32 %s8, 1
    %s14 = ssub.s32 %s8, 2
    %s21 = sadd.s32 1, %s16
    %p22 = scmp.ge.s32.totalorder %s21, 1
    %s23 = scalar_select %p22, 0, %s21
    %s24 = sadd.s32 1, %s15
    %s25 = scalar_select %p22, %s24, %s15
    %p26 = scmp.ge.s32.totalorder %s25, 2
    %s27 = scalar_select %p26, 0, %s25
    %s28 = ssub.s32 %s15, %s27
    %p29 = scmp.eq.s32.totalorder %s28, 0
    %s31 = sadd.s32 %s30, 1
    %s32 = scalar_select %p29, %s30, %s31
    %p35 = pneg %p29
    %p36 = scmp.eq.s32.totalorder %s8, 1
    %p37 = por %p35, %p36
    %p38 = scmp.ne.s32.totalorder %s30, %s33
    %p39 = scmp.eq.s32.totalorder %s8, 0
    %p40 = por %p38, %p39
    %p41 = scmp.ne.s32.totalorder %s30, %s33
    %p42 = scmp.eq.s32.totalorder %s13, 1
    %p43 = por %p41, %p42
    %p44 = scmp.ne.s32.totalorder %s33, %s34
    %p45 = scmp.eq.s32.totalorder %s13, 0
    %p46 = por %p44, %p45
    %p47 = scmp.ne.s32.totalorder %s33, %s34
    %p48 = scmp.eq.s32.totalorder %s14, 1
    %p49 = por %p47, %p48
    %p51 = scmp.ne.s32.totalorder %s34, %s50
    %p52 = scmp.eq.s32.totalorder %s14, 0
    %p53 = por %p51, %p52
    %s54 = ssub.s32 %s16, %s23
    %p55 = scmp.eq.s32.totalorder %s54, 0
    %s57 = sadd.s32 %s56, 1
    %s58 = scalar_select %p55, %s56, %s57
    %p61 = pneg %p55
    %p62 = scmp.eq.s32.totalorder %s8, 1
    %p63 = por %p61, %p62
    %p64 = scmp.ne.s32.totalorder %s56, %s59
    %p65 = scmp.eq.s32.totalorder %s8, 0
    %p66 = por %p64, %p65
    %p67 = scmp.ne.s32.totalorder %s56, %s59
    %p68 = scmp.eq.s32.totalorder %s13, 1
    %p69 = por %p67, %p68
    %p70 = scmp.ne.s32.totalorder %s59, %s60
    %p71 = scmp.eq.s32.totalorder %s13, 0
    %p72 = por %p70, %p71
    %p73 = scmp.ne.s32.totalorder %s59, %s60
    %p74 = scmp.eq.s32.totalorder %s14, 1
    %p75 = por %p73, %p74
    %p77 = scmp.ne.s32.totalorder %s60, %s76
    %p78 = scmp.eq.s32.totalorder %s14, 0
    %p79 = por %p77, %p78
    %s80 = ssub.s32 %s15, %s27
    %p81 = scmp.eq.s32.totalorder %s80, 0
    %s83 = sadd.s32 %s82, 1
    %s84 = scalar_select %p81, %s82, %s83
    %p87 = pneg %p81
    %p88 = scmp.eq.s32.totalorder %s8, 1
    %p89 = por %p87, %p88
    %p90 = scmp.ne.s32.totalorder %s82, %s85
    %p91 = scmp.eq.s32.totalorder %s8, 0
    %p92 = por %p90, %p91
    %p93 = scmp.ne.s32.totalorder %s82, %s85
    %p94 = scmp.eq.s32.totalorder %s13, 1
    %p95 = por %p93, %p94
    %p96 = scmp.ne.s32.totalorder %s85, %s86
    %p97 = scmp.eq.s32.totalorder %s13, 0
    %p98 = por %p96, %p97
    %p99 = scmp.ne.s32.totalorder %s85, %s86
    %p100 = scmp.eq.s32.totalorder %s14, 1
    %p101 = por %p99, %p100
    %p103 = scmp.ne.s32.totalorder %s86, %s102
    %p104 = scmp.eq.s32.totalorder %s14, 0
    %p105 = por %p103, %p104
    %p106 = scmp.le.s32.totalorder 1, %s8
    %p107 = scmp.lt.s32.totalorder %s8, 3
    %p108 = pnand %p106, %p107
    %p109 = pneg %p108
    // Predicated region
    $region9: #{tpu_custom_call.1} parent=5 // pred_check
      _
    $region10: #{tpu_custom_call.1} parent=5 // pred_check_branch
      %111 = sbr.rel (%p108) target = $region12
    $region11: #{tpu_custom_call.1} parent=5 // pred_region
      %s112 = ssub.s32 %s8, 1
      // Predicated region
      $region13: #{tpu_custom_call.1} parent=11 // pred_check
        %p113 = pneg %p72
      $region14: #{tpu_custom_call.1} parent=11 // pred_check_branch
        %115 = sbr.rel (%p113) target = $region16
      $region15: #{tpu_custom_call.1} parent=11 // pred_region
        %p116 = scmp.lt.s32.totalorder %s18, 0
        %s117 = scalar_select %p116, %s18, 0
        %s118 = scalar_lea.vmem %s1, %s117
      $region16: #{tpu_custom_call.1} parent=11 // pred_fallthru
        _
    $region12: #{tpu_custom_call.1} parent=5 // pred_fallthru
      _
    %p119 = scmp.lt.s32.totalorder %s8, 2
    // Predicated region
    $region17: #{tpu_custom_call.1} parent=5 // pred_check
      %p120 = pneg %p119
    $region18: #{tpu_custom_call.1} parent=5 // pred_check_branch
      %122 = sbr.rel (%p120) target = $region20
    $region19: #{tpu_custom_call.1} parent=5 // pred_region
      // Predicated region
      $region21: #{tpu_custom_call.1} parent=19 // pred_check
        %p123 = pneg %p40
      $region22: #{tpu_custom_call.1} parent=19 // pred_check_branch
        %125 = sbr.rel (%p123) target = $region24
      $region23: #{tpu_custom_call.1} parent=19 // pred_region
        %s126 = smul.u32 8, %s15
        %p127 = scmp.lt.s32.totalorder %s126, 15
        %s128 = scalar_select %p127, %s126, 15
        %s129 = smul.addr %s128, 8
        %s130 = scalar_lea.vmem %s0, %s129
        %s131 = smul.u32 8, %s15
      $region24: #{tpu_custom_call.1} parent=19 // pred_fallthru
        _
    $region20: #{tpu_custom_call.1} parent=5 // pred_fallthru
      _
    %p132 = scmp.le.s32.totalorder 1, %s8
    %p133 = scmp.lt.s32.totalorder %s8, 3
    %p134 = pnand %p132, %p133
    %p135 = pneg %p134
    // Predicated region
    $region25: #{tpu_custom_call.1} parent=5 // pred_check
      _
    $region26: #{tpu_custom_call.1} parent=5 // pred_check_branch
      %137 = sbr.rel (%p134) target = $region28
    $region27: #{tpu_custom_call.1} parent=5 // pred_region
      %s138 = ssub.s32 %s8, 1
      %s139 = smul.u32 8, %s17
      %p140 = scmp.lt.s32.totalorder %s139, 15
      %s141 = scalar_select %p140, %s139, 15
      %s142 = smul.addr %s141, 8
      %s143 = scalar_lea.vmem %s0, %s142
      %p144 = pneg %p46
      %p145 = pneg %p43
      %p146 = scmp.lt.s32.totalorder %s18, 0
      %s147 = scalar_select %p146, %s18, 0
      %s148 = scalar_lea.vmem %s1, %s147
      %p149 = pneg %p72
      %p150 = pneg %p69
      %p151 = pneg %p98
      %p152 = pneg %p95
      %s153 = smul.u32 8, %s17
      %p154 = scmp.lt.s32.totalorder %s153, 15
      %s155 = scalar_select %p154, %s153, 15
      %s156 = smul.addr %s155, 8
      %s157 = scalar_lea.vmem %s2, %s156
      %s158 = smul.u32 8, %s17
      %p159 = scmp.lt.s32.totalorder %s158, 15
      %s160 = scalar_select %p159, %s158, 15
      %s161 = smul.addr %s160, 8
      %s162 = scalar_lea.vmem %s0, %s161
      %s163 = smul.u32 8, %s17
      %p164 = scmp.lt.s32.totalorder %s18, 0
      %s165 = scalar_select %p164, %s18, 0
      %s166 = scalar_lea.vmem %s1, %s165
      %s167 = smul.u32 8, %s17
      %p168 = scmp.lt.s32.totalorder %s167, 15
      %s169 = scalar_select %p168, %s167, 15
      %s170 = smul.addr %s169, 8
      %s171 = scalar_lea.vmem %s2, %s170
      %s172 = smul.u32 8, %s17
      %v173 = vld [vmem:[%s162] sm:$0xff]
      %v174 = vld [vmem:[%s162 + $0x8] sm:$0xff]
      %v175 = vld [vmem:[%s162 + $0x10] sm:$0xff]
      %v176 = vld [vmem:[%s162 + $0x18] sm:$0xff]
      %v177 = vld [vmem:[%s162 + $0x20] sm:$0xff]
      %v178 = vld [vmem:[%s162 + $0x28] sm:$0xff]
      %v179 = vld [vmem:[%s162 + $0x30] sm:$0xff]
      %v180 = vld [vmem:[%s162 + $0x38] sm:$0xff]
      %v181 = vld [vmem:[%s166] sm:$0x1]
      %183 = vset.pattern.permute.xlu0 0
      %184 = vperm.xlu0 %183, %v173
      %v185 = vpop.permute.xlu0 %184
      %188 = vset.pattern.permute.xlu0 0
      %189 = vperm.xlu0 %188, %v174
      %v190 = vpop.permute.xlu0 %189
      %193 = vset.pattern.permute.xlu0 0
      %194 = vperm.xlu0 %193, %v175
      %v195 = vpop.permute.xlu0 %194
      %198 = vset.pattern.permute.xlu0 0
      %199 = vperm.xlu0 %198, %v176
      %v200 = vpop.permute.xlu0 %199
      %203 = vset.pattern.permute.xlu0 0
      %204 = vperm.xlu0 %203, %v177
      %v205 = vpop.permute.xlu0 %204
      %208 = vset.pattern.permute.xlu0 0
      %209 = vperm.xlu0 %208, %v178
      %v210 = vpop.permute.xlu0 %209
      %213 = vset.pattern.permute.xlu0 0
      %214 = vperm.xlu0 %213, %v179
      %v215 = vpop.permute.xlu0 %214
      %218 = vset.pattern.permute.xlu0 0
      %219 = vperm.xlu0 %218, %v180
      %v220 = vpop.permute.xlu0 %219
      %v223 = vlaneseq
      %v224 = vshrl.u32 %v223, 7
      %v225 = vsub.s32 0, %v224
      %v226 = vrot.slane %v181, %v225
      %v228 = vsub.f32 %v185, %v226
      %v229 = vsub.f32 %v190, %v226
      %v230 = vsub.f32 %v195, %v226
      %v231 = vsub.f32 %v200, %v226
      %v232 = vsub.f32 %v205, %v226
      %v233 = vsub.f32 %v210, %v226
      %v234 = vsub.f32 %v215, %v226
      %v235 = vsub.f32 %v220, %v226
      %v236 = vmul.f32 %v228, -0.3205989
      %v237 = vmul.f32 %v229, -0.3205989
      %v238 = vmul.f32 %v230, -0.3205989
      %v239 = vmul.f32 %v231, -0.3205989
      %v240 = vmul.f32 %v232, -0.3205989
      %v241 = vmul.f32 %v233, -0.3205989
      %v242 = vmul.f32 %v234, -0.3205989
      %v243 = vmul.f32 %v235, -0.3205989
      %v244 = vmul.f32 %v236, %v228
      %v245 = vmul.f32 %v237, %v229
      %v246 = vmul.f32 %v238, %v230
      %v247 = vmul.f32 %v239, %v231
      %v248 = vmul.f32 %v240, %v232
      %v249 = vmul.f32 %v241, %v233
      %v250 = vmul.f32 %v242, %v234
      %v251 = vmul.f32 %v243, %v235
      %v252 = vpow.pop %v244
      %v253 = vpow.pop %v245
      %v254 = vpow.pop %v246
      %v255 = vpow.pop %v247
      %v256 = vpow.pop %v248
      %v257 = vpow.pop %v249
      %v258 = vpow.pop %v250
      %v259 = vpow.pop %v251
      %260 = vadd.xlane.f32.xlu0 %v252
      %v261 = vpop.xlane.xlu0 %260
      %262 = vadd.xlane.f32.xlu0 %v253
      %v263 = vpop.xlane.xlu0 %262
      %264 = vadd.xlane.f32.xlu0 %v254
      %v265 = vpop.xlane.xlu0 %264
      %266 = vadd.xlane.f32.xlu0 %v255
      %v267 = vpop.xlane.xlu0 %266
      %268 = vadd.xlane.f32.xlu0 %v256
      %v269 = vpop.xlane.xlu0 %268
      %270 = vadd.xlane.f32.xlu0 %v257
      %v271 = vpop.xlane.xlu0 %270
      %272 = vadd.xlane.f32.xlu0 %v258
      %v273 = vpop.xlane.xlu0 %272
      %274 = vadd.xlane.f32.xlu0 %v259
      %v275 = vpop.xlane.xlu0 %274
      %276 = vrot.lane.b32.xlu0 %v173, 127
      %v277 = vpop.permute.xlu0 %276
      %278 = vrot.lane.b32.xlu0 %v174, 127
      %v279 = vpop.permute.xlu0 %278
      %280 = vrot.lane.b32.xlu0 %v175, 127
      %v281 = vpop.permute.xlu0 %280
      %282 = vrot.lane.b32.xlu0 %v176, 127
      %v283 = vpop.permute.xlu0 %282
      %284 = vrot.lane.b32.xlu0 %v177, 127
      %v285 = vpop.permute.xlu0 %284
      %286 = vrot.lane.b32.xlu0 %v178, 127
      %v287 = vpop.permute.xlu0 %286
      %288 = vrot.lane.b32.xlu0 %v179, 127
      %v289 = vpop.permute.xlu0 %288
      %290 = vrot.lane.b32.xlu0 %v180, 127
      %v291 = vpop.permute.xlu0 %290
      %v300 = vsub.f32 %v173, %v277
      %v301 = vsub.f32 %v174, %v279
      %v302 = vsub.f32 %v175, %v281
      %v303 = vsub.f32 %v176, %v283
      %v304 = vsub.f32 %v177, %v285
      %v305 = vsub.f32 %v178, %v287
      %v306 = vsub.f32 %v179, %v289
      %v307 = vsub.f32 %v180, %v291
      %v308 = vlog2.pop %v261
      %v309 = vmul.f32 %v308, 0.6931472
      %v310 = vlog2.pop %v263
      %v311 = vmul.f32 %v310, 0.6931472
      %v312 = vlog2.pop %v265
      %v313 = vmul.f32 %v312, 0.6931472
      %v314 = vlog2.pop %v267
      %v315 = vmul.f32 %v314, 0.6931472
      %v316 = vlog2.pop %v269
      %v317 = vmul.f32 %v316, 0.6931472
      %v318 = vlog2.pop %v271
      %v319 = vmul.f32 %v318, 0.6931472
      %v320 = vlog2.pop %v273
      %v321 = vmul.f32 %v320, 0.6931472
      %v322 = vlog2.pop %v275
      %v323 = vmul.f32 %v322, 0.6931472
      %v324 = vmul.f32 %v300, -0.22222222
      %v325 = vmul.f32 %v301, -0.22222222
      %v326 = vmul.f32 %v302, -0.22222222
      %v327 = vmul.f32 %v303, -0.22222222
      %v328 = vmul.f32 %v304, -0.22222222
      %v329 = vmul.f32 %v305, -0.22222222
      %v330 = vmul.f32 %v306, -0.22222222
      %v331 = vmul.f32 %v307, -0.22222222
      %v332 = vmul.f32 %v324, %v300
      %v333 = vmul.f32 %v325, %v301
      %v334 = vmul.f32 %v326, %v302
      %v335 = vmul.f32 %v327, %v303
      %v336 = vmul.f32 %v328, %v304
      %v337 = vmul.f32 %v329, %v305
      %v338 = vmul.f32 %v330, %v306
      %v339 = vmul.f32 %v331, %v307
      %v340 = vsub.f32 %v309, %v332
      %v341 = vsub.f32 %v311, %v333
      %v342 = vsub.f32 %v313, %v334
      %v343 = vsub.f32 %v315, %v335
      %v344 = vsub.f32 %v317, %v336
      %v345 = vsub.f32 %v319, %v337
      %v346 = vsub.f32 %v321, %v338
      %v347 = vsub.f32 %v323, %v339
      %vm348 = vcmask 7168
      %349 = vst.msk [vmem:[%s171] sm:$0xff] %vm348, %v340
      %350 = vst.msk [vmem:[%s171 + $0x8] sm:$0xff] %vm348, %v341
      %351 = vst.msk [vmem:[%s171 + $0x10] sm:$0xff] %vm348, %v342
      %352 = vst.msk [vmem:[%s171 + $0x18] sm:$0xff] %vm348, %v343
      %353 = vst.msk [vmem:[%s171 + $0x20] sm:$0xff] %vm348, %v344
      %354 = vst.msk [vmem:[%s171 + $0x28] sm:$0xff] %vm348, %v345
      %355 = vst.msk [vmem:[%s171 + $0x30] sm:$0xff] %vm348, %v346
      %356 = vst.msk [vmem:[%s171 + $0x38] sm:$0xff] %vm348, %v347
      %s357 = smul.u32 8, %s17
      %p358 = scmp.lt.s32.totalorder %s357, 15
      %s359 = scalar_select %p358, %s357, 15
      %s360 = smul.addr %s359, 8
      %s361 = scalar_lea.vmem %s2, %s360
      // Predicated region
      $region29: #{tpu_custom_call.1} parent=27 // pred_check
        %p362 = pneg %p95
      $region30: #{tpu_custom_call.1} parent=27 // pred_check_branch
        %364 = sbr.rel (%p362) target = $region32
      $region31: #{tpu_custom_call.1} parent=27 // pred_region
        %s365 = smul.u32 8, %s17
      $region32: #{tpu_custom_call.1} parent=27 // pred_fallthru
        _
    $region28: #{tpu_custom_call.1} parent=5 // pred_fallthru
      _
    %p366 = scmp.le.s32.totalorder 2, %s8
    // Predicated region
    $region33: #{tpu_custom_call.1} parent=5 // pred_check
      %p367 = pneg %p366
    $region34: #{tpu_custom_call.1} parent=5 // pred_check_branch
      %369 = sbr.rel (%p367) target = $region36
    $region35: #{tpu_custom_call.1} parent=5 // pred_region
      %s370 = ssub.s32 %s8, 2
      // Predicated region
      $region37: #{tpu_custom_call.1} parent=35 // pred_check
        %p371 = pneg %p101
      $region38: #{tpu_custom_call.1} parent=35 // pred_check_branch
        %373 = sbr.rel (%p371) target = $region40
      $region39: #{tpu_custom_call.1} parent=35 // pred_region
        %s374 = smul.u32 8, %s19
        %p375 = scmp.lt.s32.totalorder %s374, 15
        %s376 = scalar_select %p375, %s374, 15
        %s377 = smul.addr %s376, 8
        %s378 = scalar_lea.vmem %s2, %s377
      $region40: #{tpu_custom_call.1} parent=35 // pred_fallthru
        _
    $region36: #{tpu_custom_call.1} parent=5 // pred_fallthru
      _
  $region6: #{tpu_custom_call.1} parent=0 // loop_footer
    %s12 = sadd.s32 1, %s8
  $region7: #{tpu_custom_call.1} parent=0 // loop_footer_branch
    %7 = sbr.rel target = $region3
  $region8: #{tpu_custom_call.1} parent=0 // loop_exit
    _

</llo_original>
